<compile_context>
chip_gen: v6e
topology: v6e:2x2x1
jax: 0.10.0
libtpu: 0.0.40
codegen_flags: <defaults>
</compile_context>

<pallas_src>
import math

import jax
import jax.numpy as jnp
from jax.experimental import pallas as pl
from jax.experimental.pallas import tpu as pltpu

IMAGE_SIZE = 28 * 28      # 784, from FirstNet.__init__
H0 = 100                  # fc0 out_features
H1 = 50                   # fc1 out_features

IN_PAD = 896              # 7 * 128  (lane-dense K for fc0)
H0_PAD = 128              # lane-dense hidden width / K for fc1
H1_PAD = 128              # lane-dense output width (store full vregs, slice later)

NEG_BIG = -1e30           # finite "minus infinity" for masking padded class lanes


def firstnet_kernel(x_ref, w0_ref, b0_ref, w1_ref, b1_ref, o_ref):
    # x_ref:  (TB, 896)  bf16      w0_ref: (896, 128) bf16     b0_ref: (1, 128) f32
    # w1_ref: (128, 128) bf16      b1_ref: (1, 128)  f32       o_ref:  (TB, 128) f32
    x = x_ref[...]

    # fc0 + ReLU (MXU matmul, f32 accumulation)
    h0 = jnp.dot(x, w0_ref[...], preferred_element_type=jnp.float32) + b0_ref[...]
    h0 = jnp.maximum(h0, 0.0)

    # fc1 + ReLU (feed MXU with bf16 again)
    h1 = jnp.dot(h0.astype(jnp.bfloat16), w1_ref[...],
                 preferred_element_type=jnp.float32) + b1_ref[...]
    h1 = jnp.maximum(h1, 0.0)

    # Padded class lanes are exactly 0 after ReLU; push them to a huge negative
    # value so log_softmax normalizes over the 50 real classes only (exp underflows
    # to 0 for the padded lanes).
    col = jax.lax.broadcasted_iota(jnp.int32, h1.shape, 1)
    logits = jnp.where(col < H1, h1, NEG_BIG)

    # numerically stable log_softmax over dim=1
    m = jnp.max(logits, axis=-1, keepdims=True)
    s = logits - m
    lse = jnp.log(jnp.sum(jnp.exp(s), axis=-1, keepdims=True))
    o_ref[...] = s - lse


def firstnet_forward(x, w0, b0, w1, b1, *, batch_tile=256):
    """x: any shape reshapeable to (-1, 784). Returns (N, 50) f32 log-probs."""
    assert batch_tile % 16 == 0, "batch_tile must be a multiple of 16 for bf16 tiles"

    x2d = x.reshape(-1, IMAGE_SIZE)
    n = x2d.shape[0]

    # Shrink the tile for small batches (still a multiple of 16 rows).
    tb = min(batch_tile, pl.cdiv(n, 16) * 16)
    n_pad = pl.cdiv(n, tb) * tb              # ragged batch -> zero-pad rows

    # Zero-pad + cast the activation stream and weights (zero K-padding is exact).
    xp = jnp.zeros((n_pad, IN_PAD), jnp.bfloat16)
    xp = xp.at[:n, :IMAGE_SIZE].set(x2d.astype(jnp.bfloat16))

    w0p = jnp.zeros((IN_PAD, H0_PAD), jnp.bfloat16)
    w0p = w0p.at[:IMAGE_SIZE, :H0].set(w0.astype(jnp.bfloat16))
    b0p = jnp.zeros((1, H0_PAD), jnp.float32).at[0, :H0].set(b0.astype(jnp.float32))

    w1p = jnp.zeros((H0_PAD, H1_PAD), jnp.bfloat16)
    w1p = w1p.at[:H0, :H1].set(w1.astype(jnp.bfloat16))
    b1p = jnp.zeros((1, H1_PAD), jnp.float32).at[0, :H1].set(b1.astype(jnp.float32))

    grid = (n_pad // tb,)
    out = pl.pallas_call(
        firstnet_kernel,
        out_shape=jax.ShapeDtypeStruct((n_pad, H1_PAD), jnp.float32),
        grid_spec=pl.GridSpec(
            grid=grid,
            in_specs=[
                pl.BlockSpec((tb, IN_PAD), lambda i: (i, 0)),
                pl.BlockSpec((IN_PAD, H0_PAD), lambda i: (0, 0)),   # weights stay resident
                pl.BlockSpec((1, H0_PAD), lambda i: (0, 0)),
                pl.BlockSpec((H0_PAD, H1_PAD), lambda i: (0, 0)),
                pl.BlockSpec((1, H1_PAD), lambda i: (0, 0)),
            ],
            out_specs=pl.BlockSpec((tb, H1_PAD), lambda i: (i, 0)),
        ),
        compiler_params=pltpu.CompilerParams(
            # batch axis is embarrassingly parallel -> megacore / 2-TC sharding on v7x
            dimension_semantics=("parallel",),
        ),
    )(xp, w0p, b0p, w1p, b1p)

    # Drop batch padding and padded class lanes.
    return out[:n, :H1]


def init_params(key):
    # Deterministic init mimicking nn.Linear defaults: U(-1/sqrt(fan_in), 1/sqrt(fan_in)).
    k0w, k0b, k1w, k1b = jax.random.split(key, 4)
    bound0 = 1.0 / math.sqrt(IMAGE_SIZE)
    bound1 = 1.0 / math.sqrt(H0)
    w0 = jax.random.uniform(k0w, (IMAGE_SIZE, H0), jnp.float32, -bound0, bound0)
    b0 = jax.random.uniform(k0b, (H0,), jnp.float32, -bound0, bound0)
    w1 = jax.random.uniform(k1w, (H0, H1), jnp.float32, -bound1, bound1)
    b1 = jax.random.uniform(k1b, (H1,), jnp.float32, -bound1, bound1)
    return w0, b0, w1, b1


def ref_forward(x, w0, b0, w1, b1):
    # Pure-JAX reference using the same bf16 activation/weight stream + f32 accumulation
    # the kernel uses (FirstNet.forward semantics).
    x2d = x.reshape(-1, IMAGE_SIZE).astype(jnp.bfloat16)
    h0 = jnp.maximum(
        jnp.dot(x2d, w0.astype(jnp.bfloat16), preferred_element_type=jnp.float32) + b0, 0.0)
    h1 = jnp.maximum(
        jnp.dot(h0.astype(jnp.bfloat16), w1.astype(jnp.bfloat16),
                preferred_element_type=jnp.float32) + b1, 0.0)
    return jax.nn.log_softmax(h1, axis=1)


if __name__ == "__main__":
    key = jax.random.PRNGKey(0)
    kx, kp = jax.random.split(key)

    # Small "MNIST-like" NCHW batch; deliberately NOT a multiple of the batch tile
    # so both the ragged-batch padding and the multi-step grid pipeline are exercised.
    batch = 50
    x = jax.random.normal(kx, (batch, 1, 28, 28), jnp.float32)

    w0, b0, w1, b1 = init_params(kp)

    out = firstnet_forward(x, w0, b0, w1, b1, batch_tile=32)  # 2 grid steps
    out = jax.block_until_ready(out)

    ref = ref_forward(x, w0, b0, w1, b1)

    assert out.shape == (batch, H1)
    assert bool(jnp.all(jnp.isfinite(out)))
    assert jnp.allclose(out, ref, atol=1e-2, rtol=1e-2)
    # log-probs must normalize over exactly the 50 real classes
    assert jnp.allclose(jnp.sum(jnp.exp(out), axis=1), 1.0, atol=1e-3)

    print("KERNEL_OK")
</pallas_src>

<mosaic_0001>
module attributes {stable_mosaic.version = 11 : i64} {
  func.func @firstnet_kernel(%arg0: i32, %arg1: memref<32x896xbf16, #tpu.memory_space<vmem>>, %arg2: memref<896x128xbf16, #tpu.memory_space<vmem>>, %arg3: memref<1x128xf32, #tpu.memory_space<vmem>>, %arg4: memref<128x128xbf16, #tpu.memory_space<vmem>>, %arg5: memref<1x128xf32, #tpu.memory_space<vmem>>, %arg6: memref<32x128xf32, #tpu.memory_space<vmem>>) attributes {dimension_semantics = [#tpu.dimension_semantics<parallel>], iteration_bounds = array<i64: 2>, scalar_prefetch = 0 : i64, scratch_operands = 0 : i64, tpu.core_type = #tpu.core_type<tc>, window_params = [{transform_indices = @transform_0, window_bounds = array<i64: 32, 896>}, {pipeline_mode = #tpu.pipeline_mode<synchronous>, transform_indices = @transform_1, window_bounds = array<i64: 896, 128>}, {pipeline_mode = #tpu.pipeline_mode<synchronous>, transform_indices = @transform_2, window_bounds = array<i64: 1, 128>}, {pipeline_mode = #tpu.pipeline_mode<synchronous>, transform_indices = @transform_3, window_bounds = array<i64: 128, 128>}, {pipeline_mode = #tpu.pipeline_mode<synchronous>, transform_indices = @transform_4, window_bounds = array<i64: 1, 128>}, {transform_indices = @transform_5, window_bounds = array<i64: 32, 128>}]} {
    %c0 = arith.constant 0 : index
    %c0_0 = arith.constant 0 : index
    %0 = vector.load %arg1[%c0, %c0_0] : memref<32x896xbf16, #tpu.memory_space<vmem>>, vector<32x896xbf16>
    %c0_1 = arith.constant 0 : index
    %c0_2 = arith.constant 0 : index
    %1 = vector.load %arg2[%c0_1, %c0_2] : memref<896x128xbf16, #tpu.memory_space<vmem>>, vector<896x128xbf16>
    %cst = arith.constant dense<0.000000e+00> : vector<32x128xf32>
    %2 = tpu.matmul %0, %1, %cst {dimension_numbers = #tpu.dot_dimension_numbers<[1], [0], [0], [1], [0, 0, 1, 1], [], []>} : vector<32x896xbf16>, vector<896x128xbf16>, vector<32x128xf32> -> vector<32x128xf32>
    %c0_3 = arith.constant 0 : index
    %c0_4 = arith.constant 0 : index
    %3 = vector.load %arg3[%c0_3, %c0_4] : memref<1x128xf32, #tpu.memory_space<vmem>>, vector<1x128xf32>
    %4 = vector.broadcast %3 : vector<1x128xf32> to vector<32x128xf32>
    %5 = arith.addf %2, %4 : vector<32x128xf32>
    %cst_5 = arith.constant 0.000000e+00 : f32
    %6 = vector.broadcast %cst_5 : f32 to vector<32x128xf32>
    %7 = arith.maximumf %5, %6 : vector<32x128xf32>
    %8 = arith.truncf %7 : vector<32x128xf32> to vector<32x128xbf16>
    %c0_6 = arith.constant 0 : index
    %c0_7 = arith.constant 0 : index
    %9 = vector.load %arg4[%c0_6, %c0_7] : memref<128x128xbf16, #tpu.memory_space<vmem>>, vector<128x128xbf16>
    %cst_8 = arith.constant dense<0.000000e+00> : vector<32x128xf32>
    %10 = tpu.matmul %8, %9, %cst_8 {dimension_numbers = #tpu.dot_dimension_numbers<[1], [0], [0], [1], [0, 0, 1, 1], [], []>} : vector<32x128xbf16>, vector<128x128xbf16>, vector<32x128xf32> -> vector<32x128xf32>
    %c0_9 = arith.constant 0 : index
    %c0_10 = arith.constant 0 : index
    %11 = vector.load %arg5[%c0_9, %c0_10] : memref<1x128xf32, #tpu.memory_space<vmem>>, vector<1x128xf32>
    %12 = vector.broadcast %11 : vector<1x128xf32> to vector<32x128xf32>
    %13 = arith.addf %10, %12 : vector<32x128xf32>
    %cst_11 = arith.constant 0.000000e+00 : f32
    %14 = vector.broadcast %cst_11 : f32 to vector<32x128xf32>
    %15 = arith.maximumf %13, %14 : vector<32x128xf32>
    %16 = tpu.iota {dimensions = array<i32: 1>} : vector<32x128xi32>
    %c50_i32 = arith.constant 50 : i32
    %17 = vector.broadcast %c50_i32 : i32 to vector<32x128xi32>
    %18 = arith.cmpi slt, %16, %17 : vector<32x128xi32>
    %cst_12 = arith.constant -1.000000e+30 : f32
    %19 = vector.broadcast %cst_12 : f32 to vector<32x128xf32>
    %20 = arith.select %18, %15, %19 : vector<32x128xi1>, vector<32x128xf32>
    %cst_13 = arith.constant dense<0xFF800000> : vector<32xf32>
    %21 = vector.multi_reduction <maximumf>, %20, %cst_13 [1] : vector<32x128xf32> to vector<32xf32>
    %22 = vector.shape_cast %21 : vector<32xf32> to vector<32x1xf32>
    %23 = vector.broadcast %22 : vector<32x1xf32> to vector<32x128xf32>
    %24 = arith.subf %20, %23 : vector<32x128xf32>
    %25 = math.exp %24 : vector<32x128xf32>
    %cst_14 = arith.constant dense<0.000000e+00> : vector<32xf32>
    %26 = vector.multi_reduction <add>, %25, %cst_14 [1] : vector<32x128xf32> to vector<32xf32>
    %27 = vector.shape_cast %26 : vector<32xf32> to vector<32x1xf32>
    %28 = math.log %27 : vector<32x1xf32>
    %29 = vector.broadcast %28 : vector<32x1xf32> to vector<32x128xf32>
    %30 = arith.subf %24, %29 : vector<32x128xf32>
    %c0_15 = arith.constant 0 : index
    %c0_16 = arith.constant 0 : index
    %31 = vector.load %arg6[%c0_15, %c0_16] : memref<32x128xf32, #tpu.memory_space<vmem>>, vector<32x128xf32>
    tpu.vector_store %arg6[%c0_15, %c0_16], %30 {strides = array<i32>} : memref<32x128xf32, #tpu.memory_space<vmem>>, vector<32x128xf32>,
    return
  }
  func.func @transform_0(%arg0: i32) -> (i32, i32) {
    %c0_i32 = arith.constant 0 : i32
    %c0_i32_0 = arith.constant 0 : i32
    return %arg0, %c0_i32 : i32, i32
  }
  func.func @transform_1(%arg0: i32) -> (i32, i32) {
    %c0_i32 = arith.constant 0 : i32
    %c0_i32_0 = arith.constant 0 : i32
    %c0_i32_1 = arith.constant 0 : i32
    return %c0_i32, %c0_i32_0 : i32, i32
  }
  func.func @transform_2(%arg0: i32) -> (i32, i32) {
    %c0_i32 = arith.constant 0 : i32
    %c0_i32_0 = arith.constant 0 : i32
    %c0_i32_1 = arith.constant 0 : i32
    return %c0_i32, %c0_i32_0 : i32, i32
  }
  func.func @transform_3(%arg0: i32) -> (i32, i32) {
    %c0_i32 = arith.constant 0 : i32
    %c0_i32_0 = arith.constant 0 : i32
    %c0_i32_1 = arith.constant 0 : i32
    return %c0_i32, %c0_i32_0 : i32, i32
  }
  func.func @transform_4(%arg0: i32) -> (i32, i32) {
    %c0_i32 = arith.constant 0 : i32
    %c0_i32_0 = arith.constant 0 : i32
    %c0_i32_1 = arith.constant 0 : i32
    return %c0_i32, %c0_i32_0 : i32, i32
  }
  func.func @transform_5(%arg0: i32) -> (i32, i32) {
    %c0_i32 = arith.constant 0 : i32
    %c0_i32_0 = arith.constant 0 : i32
    return %arg0, %c0_i32 : i32, i32
  }
}

</mosaic_0001>

<llo_original>
// kernel: tpu_custom_call.1
$region0: #{tpu_custom_call.1}
  #allocation0 [shape = 'u32[]', space=smem, size = 0x4, offset = 0x4, fixed_abs, tag = 'smem constant byte address 0x4 - core index']
  #allocation1 [shape = 'u32[144,128]{1,0:T(1,128)}', space=vmem, size = 0x12000, scoped, tag = 'internal scratch']
  %s0 = inlined_call_operand.hbm [shape: bf16[64,896], index: 0, kind: input, shape index: {}]
  %s1 = inlined_call_operand.hbm [shape: bf16[896,128], index: 1, kind: input, shape index: {}]
  %s2 = inlined_call_operand.vmem [shape: f32[1,128], index: 2, kind: input, shape index: {}]
  %s3 = inlined_call_operand.hbm [shape: bf16[128,128], index: 3, kind: input, shape index: {}]
  %s4 = inlined_call_operand.vmem [shape: f32[1,128], index: 4, kind: input, shape index: {}]
  %s5 = inlined_call_operand.hbm [shape: f32[64,128], index: 5, kind: output, shape index: {}]
  %s6 = sld [smem:[#allocation0]]
  $region65: #{tpu_custom_call.1} parent=0
    _
  %s8 = ssub.s32 1, %s6
  %s9 = scalar_select 0, %s8, %s6
  $region1: #{tpu_custom_call.1} parent=0
    #allocation2 [shape = 'u8[114688]{0}', space=vmem, size = 0x1c000, scoped, tag = 'input window, operand 0']
    #allocation3 [shape = 's32[2]{0}', space=sflag, size = 0x8, scoped, tag = 'scoped memory for tpu_custom_call.1']
    #allocation4 [shape = 's32[2]{0}', space=sflag, size = 0x8, scoped, tag = 'scoped memory for tpu_custom_call.1']
    #allocation5 [shape = 'u8[229376]{0}', space=vmem, size = 0x38000, scoped, tag = 'input window, operand 1, single buffered']
    #allocation6 [shape = 's32[1]{0}', space=sflag, size = 0x4, scoped, tag = 'scoped memory for tpu_custom_call.1']
    #allocation7 [shape = 'u8[32768]{0}', space=vmem, size = 0x8000, scoped, tag = 'input window, operand 3, single buffered']
    #allocation8 [shape = 'u8[32768]{0}', space=vmem, size = 0x8000, scoped, tag = 'output window, operand 0']
    %10 = vsyncpa [#allocation3], 0
    %s11 = scalar_lea.sflag [#allocation3], 1
    %12 = vsyncpa %s11, 0
    %13 = vsyncpa [#allocation6], 0
    %14 = vsyncpa [#allocation4], 0
    %s15 = scalar_lea.sflag [#allocation4], 1
    %16 = vsyncpa %s15, 0
    loop: start=0, step=1, limit=4
    $region2: #{tpu_custom_call.1} parent=1 // loop_pre_header
      _
    $region3: #{tpu_custom_call.1} parent=1 // loop_header
      %s18 = sphi 0, %s22
      %p19 = scmp.ge.s32.totalorder %s18, 4
      %s28 = sphi 0, %s30
      %s31 = sphi 0, %s28
      %s32 = sphi 0, %s31
      %s48 = sphi 0, %s32
      %s52 = sphi 0, %s52
      %s54 = sphi 0, %s52
      %s55 = sphi 0, %s54
      %s69 = sphi 0, %s55
      %s73 = sphi 0, %s73
      %s75 = sphi 0, %s73
      %s76 = sphi 0, %s75
      %s90 = sphi 0, %s76
      %s94 = sphi 0, %s94
      %s96 = sphi 0, %s94
      %s97 = sphi 0, %s96
      %s111 = sphi 0, %s97
      %s115 = sphi 0, %s115
      %s117 = sphi 0, %s115
      %s118 = sphi 0, %s117
      %s132 = sphi 0, %s118
      %s138 = sphi 0, %s140
      %s141 = sphi 0, %s138
      %s142 = sphi 0, %s141
      %s158 = sphi 0, %s142
    $region4: #{tpu_custom_call.1} parent=1 // loop_header_branch
      %21 = sbr.rel (%p19) target = $region8
    $region5: #{tpu_custom_call.1} parent=1 // loop_body
      %s23 = ssub.s32 %s18, 1
      %s24 = ssub.s32 %s18, 2
      %s25 = sadd.s32 %s18, 1
      %s26 = ssub.s32 %s18, %s25
      %p27 = scmp.eq.s32.totalorder %s26, 0
      %s29 = sadd.s32 %s28, 1
      %s30 = scalar_select %p27, %s28, %s29
      %p33 = pneg %p27
      %p34 = scmp.eq.s32.totalorder %s18, 1
      %p35 = por %p33, %p34
      %p36 = scmp.ne.s32.totalorder %s28, %s31
      %p37 = scmp.eq.s32.totalorder %s18, 0
      %p38 = por %p36, %p37
      %p39 = scmp.ne.s32.totalorder %s28, %s31
      %p40 = scmp.eq.s32.totalorder %s23, 1
      %p41 = por %p39, %p40
      %p42 = scmp.ne.s32.totalorder %s31, %s32
      %p43 = scmp.eq.s32.totalorder %s23, 0
      %p44 = por %p42, %p43
      %p45 = scmp.ne.s32.totalorder %s31, %s32
      %p46 = scmp.eq.s32.totalorder %s24, 1
      %p47 = por %p45, %p46
      %p49 = scmp.ne.s32.totalorder %s32, %s48
      %p50 = scmp.eq.s32.totalorder %s24, 0
      %p51 = por %p49, %p50
      %s53 = sadd.s32 %s52, 1
      %p56 = scmp.eq.s32.totalorder %s18, 1
      %p57 = scmp.ne.s32.totalorder %s52, %s54
      %p58 = scmp.eq.s32.totalorder %s18, 0
      %p59 = por %p57, %p58
      %p60 = scmp.ne.s32.totalorder %s52, %s54
      %p61 = scmp.eq.s32.totalorder %s23, 1
      %p62 = por %p60, %p61
      %p63 = scmp.ne.s32.totalorder %s54, %s55
      %p64 = scmp.eq.s32.totalorder %s23, 0
      %p65 = por %p63, %p64
      %p66 = scmp.ne.s32.totalorder %s54, %s55
      %p67 = scmp.eq.s32.totalorder %s24, 1
      %p68 = por %p66, %p67
      %p70 = scmp.ne.s32.totalorder %s55, %s69
      %p71 = scmp.eq.s32.totalorder %s24, 0
      %p72 = por %p70, %p71
      %s74 = sadd.s32 %s73, 1
      %p77 = scmp.eq.s32.totalorder %s18, 1
      %p78 = scmp.ne.s32.totalorder %s73, %s75
      %p79 = scmp.eq.s32.totalorder %s18, 0
      %p80 = por %p78, %p79
      %p81 = scmp.ne.s32.totalorder %s73, %s75
      %p82 = scmp.eq.s32.totalorder %s23, 1
      %p83 = por %p81, %p82
      %p84 = scmp.ne.s32.totalorder %s75, %s76
      %p85 = scmp.eq.s32.totalorder %s23, 0
      %p86 = por %p84, %p85
      %p87 = scmp.ne.s32.totalorder %s75, %s76
      %p88 = scmp.eq.s32.totalorder %s24, 1
      %p89 = por %p87, %p88
      %p91 = scmp.ne.s32.totalorder %s76, %s90
      %p92 = scmp.eq.s32.totalorder %s24, 0
      %p93 = por %p91, %p92
      %s95 = sadd.s32 %s94, 1
      %p98 = scmp.eq.s32.totalorder %s18, 1
      %p99 = scmp.ne.s32.totalorder %s94, %s96
      %p100 = scmp.eq.s32.totalorder %s18, 0
      %p101 = por %p99, %p100
      %p102 = scmp.ne.s32.totalorder %s94, %s96
      %p103 = scmp.eq.s32.totalorder %s23, 1
      %p104 = por %p102, %p103
      %p105 = scmp.ne.s32.totalorder %s96, %s97
      %p106 = scmp.eq.s32.totalorder %s23, 0
      %p107 = por %p105, %p106
      %p108 = scmp.ne.s32.totalorder %s96, %s97
      %p109 = scmp.eq.s32.totalorder %s24, 1
      %p110 = por %p108, %p109
      %p112 = scmp.ne.s32.totalorder %s97, %s111
      %p113 = scmp.eq.s32.totalorder %s24, 0
      %p114 = por %p112, %p113
      %s116 = sadd.s32 %s115, 1
      %p119 = scmp.eq.s32.totalorder %s18, 1
      %p120 = scmp.ne.s32.totalorder %s115, %s117
      %p121 = scmp.eq.s32.totalorder %s18, 0
      %p122 = por %p120, %p121
      %p123 = scmp.ne.s32.totalorder %s115, %s117
      %p124 = scmp.eq.s32.totalorder %s23, 1
      %p125 = por %p123, %p124
      %p126 = scmp.ne.s32.totalorder %s117, %s118
      %p127 = scmp.eq.s32.totalorder %s23, 0
      %p128 = por %p126, %p127
      %p129 = scmp.ne.s32.totalorder %s117, %s118
      %p130 = scmp.eq.s32.totalorder %s24, 1
      %p131 = por %p129, %p130
      %p133 = scmp.ne.s32.totalorder %s118, %s132
      %p134 = scmp.eq.s32.totalorder %s24, 0
      %p135 = por %p133, %p134
      %s136 = ssub.s32 %s18, %s25
      %p137 = scmp.eq.s32.totalorder %s136, 0
      %s139 = sadd.s32 %s138, 1
      %s140 = scalar_select %p137, %s138, %s139
      %p143 = pneg %p137
      %p144 = scmp.eq.s32.totalorder %s18, 1
      %p145 = por %p143, %p144
      %p146 = scmp.ne.s32.totalorder %s138, %s141
      %p147 = scmp.eq.s32.totalorder %s18, 0
      %p148 = por %p146, %p147
      %p149 = scmp.ne.s32.totalorder %s138, %s141
      %p150 = scmp.eq.s32.totalorder %s23, 1
      %p151 = por %p149, %p150
      %p152 = scmp.ne.s32.totalorder %s141, %s142
      %p153 = scmp.eq.s32.totalorder %s23, 0
      %p154 = por %p152, %p153
      %p155 = scmp.ne.s32.totalorder %s141, %s142
      %p156 = scmp.eq.s32.totalorder %s24, 1
      %p157 = por %p155, %p156
      %p159 = scmp.ne.s32.totalorder %s142, %s158
      %p160 = scmp.eq.s32.totalorder %s24, 0
      %p161 = por %p159, %p160
      %p162 = scmp.le.s32.totalorder 1, %s18
      %p163 = scmp.lt.s32.totalorder %s18, 3
      %p164 = pnand %p162, %p163
      %p165 = pneg %p164
      // Predicated region
      $region9: #{tpu_custom_call.1} parent=5 // pred_check
        _
      $region10: #{tpu_custom_call.1} parent=5 // pred_check_branch
        %167 = sbr.rel (%p164) target = $region12
      $region11: #{tpu_custom_call.1} parent=5 // pred_region
        %s168 = ssub.s32 %s18, 1
        // Predicated region
        $region13: #{tpu_custom_call.1} parent=11 // pred_check
          %p169 = pneg %p65
        $region14: #{tpu_custom_call.1} parent=11 // pred_check_branch
          %171 = sbr.rel (%p169) target = $region16
        $region15: #{tpu_custom_call.1} parent=11 // pred_region
          %s173 = ssub.s32 7168, 7168
          %174 = vsyncadd [#allocation6], %s173
          %s175 = sshll.u32 [#allocation5], 4
          %s176 = int_to_ptr.vmem [resolvable:$true] %s175
          %181 = dma.hbm_to_vmem [thread:$0]  %s1, 7168, %s176, [#allocation6], 64, 64, 4
        $region16: #{tpu_custom_call.1} parent=11 // pred_fallthru
          _
        // Predicated region
        $region17: #{tpu_custom_call.1} parent=11 // pred_check
          %p182 = pneg %p86
        $region18: #{tpu_custom_call.1} parent=11 // pred_check_branch
          %184 = sbr.rel (%p182) target = $region20
        $region19: #{tpu_custom_call.1} parent=11 // pred_region
          _
        $region20: #{tpu_custom_call.1} parent=11 // pred_fallthru
          _
        // Predicated region
        $region21: #{tpu_custom_call.1} parent=11 // pred_check
          %p185 = pneg %p107
        $region22: #{tpu_custom_call.1} parent=11 // pred_check_branch
          %187 = sbr.rel (%p185) target = $region24
        $region23: #{tpu_custom_call.1} parent=11 // pred_region
          %s189 = ssub.s32 1024, 1024
          %190 = vsyncadd [#allocation6], %s189
          %s191 = sshll.u32 [#allocation7], 4
          %s192 = int_to_ptr.vmem [resolvable:$true] %s191
          %197 = dma.hbm_to_vmem [thread:$0]  %s3, 1024, %s192, [#allocation6], 64, 64, 4
        $region24: #{tpu_custom_call.1} parent=11 // pred_fallthru
          _
        // Predicated region
        $region25: #{tpu_custom_call.1} parent=11 // pred_check
          %p198 = pneg %p128
        $region26: #{tpu_custom_call.1} parent=11 // pred_check_branch
          %200 = sbr.rel (%p198) target = $region28
        $region27: #{tpu_custom_call.1} parent=11 // pred_region
          _
        $region28: #{tpu_custom_call.1} parent=11 // pred_fallthru
          _
      $region12: #{tpu_custom_call.1} parent=5 // pred_fallthru
        _
      %p201 = scmp.lt.s32.totalorder %s18, 2
      // Predicated region
      $region29: #{tpu_custom_call.1} parent=5 // pred_check
        %p202 = pneg %p201
      $region30: #{tpu_custom_call.1} parent=5 // pred_check_branch
        %204 = sbr.rel (%p202) target = $region32
      $region31: #{tpu_custom_call.1} parent=5 // pred_region
        // Predicated region
        $region33: #{tpu_custom_call.1} parent=31 // pred_check
          %p205 = pneg %p38
        $region34: #{tpu_custom_call.1} parent=31 // pred_check_branch
          %207 = sbr.rel (%p205) target = $region36
        $region35: #{tpu_custom_call.1} parent=31 // pred_region
          %s208 = sand.u32 %s28, 1
          %s209 = scalar_lea.sflag [#allocation3], %s208
          %s210 = sand.u32 %s28, 1
          %s211 = smul.addr %s210, 112
          %s212 = scalar_lea.vmem [#allocation2], %s211
          %s213 = smul.u32 4, %s18
          %s215 = ssub.s32 1792, 1792
          %216 = vsyncadd %s209, %s215
          %s217 = smul.addr %s213, 7
          %s218 = smul.addr %s217, 64
          %s219 = scalar_lea.hbm %s0, %s218
          %s220 = sshll.u32 %s212, 4
          %s221 = int_to_ptr.vmem [resolvable:$true] %s220
          %226 = dma.hbm_to_vmem [thread:$0]  %s219, 1792, %s221, %s209, 448, 448, 28
        $region36: #{tpu_custom_call.1} parent=31 // pred_fallthru
          _
      $region32: #{tpu_custom_call.1} parent=5 // pred_fallthru
        _
      %p227 = scmp.le.s32.totalorder 1, %s18
      %p228 = scmp.lt.s32.totalorder %s18, 3
      %p229 = pnand %p227, %p228
      %p230 = pneg %p229
      // Predicated region
      $region37: #{tpu_custom_call.1} parent=5 // pred_check
        _
      $region38: #{tpu_custom_call.1} parent=5 // pred_check_branch
        %232 = sbr.rel (%p229) target = $region40
      $region39: #{tpu_custom_call.1} parent=5 // pred_region
        %s233 = ssub.s32 %s18, 1
        %s234 = sand.u32 %s31, 1
        %s235 = scalar_lea.sflag [#allocation3], %s234
        %s236 = sand.u32 %s31, 1
        %s237 = smul.addr %s236, 112
        %s238 = scalar_lea.vmem [#allocation2], %s237
        // Predicated region
        $region41: #{tpu_custom_call.1} parent=39 // pred_check
          %p239 = pneg %p44
        $region42: #{tpu_custom_call.1} parent=39 // pred_check_branch
          %241 = sbr.rel (%p239) target = $region44
        $region43: #{tpu_custom_call.1} parent=39 // pred_region
          %242 = dma.done %s235, 1792
        $region44: #{tpu_custom_call.1} parent=39 // pred_fallthru
          _
        // Predicated region
        $region45: #{tpu_custom_call.1} parent=39 // pred_check
          %p243 = pneg %p65
        $region46: #{tpu_custom_call.1} parent=39 // pred_check_branch
          %245 = sbr.rel (%p243) target = $region48
        $region47: #{tpu_custom_call.1} parent=39 // pred_region
          %246 = dma.done [#allocation6], 7168
        $region48: #{tpu_custom_call.1} parent=39 // pred_fallthru
          _
        // Predicated region
        $region49: #{tpu_custom_call.1} parent=39 // pred_check
          %p247 = pneg %p107
        $region50: #{tpu_custom_call.1} parent=39 // pred_check_branch
          %249 = sbr.rel (%p247) target = $region52
        $region51: #{tpu_custom_call.1} parent=39 // pred_region
          %250 = dma.done [#allocation6], 1024
        $region52: #{tpu_custom_call.1} parent=39 // pred_fallthru
          _
        %s251 = sand.u32 %s31, 1
        %s252 = scalar_lea.sflag [#allocation3], %s251
        %s253 = sand.u32 %s31, 1
        %s254 = smul.addr %s253, 112
        %s255 = scalar_lea.vmem [#allocation2], %s254
        %p256 = pneg %p44
        %p257 = pneg %p41
        %p258 = pneg %p65
        %p259 = pneg %p62
        %p260 = pneg %p86
        %p261 = pneg %p83
        %p262 = pneg %p107
        %p263 = pneg %p104
        %p264 = pneg %p128
        %p265 = pneg %p125
        %p266 = pneg %p154
        %p267 = pneg %p151
        %s268 = sand.u32 %s141, 1
        %s269 = scalar_lea.sflag [#allocation4], %s268
        %s270 = sand.u32 %s141, 1
        %s271 = smul.addr %s270, 32
        %s272 = scalar_lea.vmem [#allocation8], %s271
        %s273 = smul.u32 4, %s23
        %s274 = smul.u32 4, %s23
        %v276 = vld [vmem:[%s238] sm:$0xff]
        %v277 = vld [vmem:[%s238 + $0x8] sm:$0xff]
        %v278 = vld [vmem:[%s238 + $0x10] sm:$0xff]
        %v279 = vld [vmem:[%s238 + $0x18] sm:$0xf]
        %v280 = vld [vmem:[%s238 + $0x1c] sm:$0xff]
        %v281 = vld [vmem:[%s238 + $0x24] sm:$0xff]
        %v282 = vld [vmem:[%s238 + $0x2c] sm:$0xff]
        %v283 = vld [vmem:[%s238 + $0x34] sm:$0xf]
        %v284 = vld [vmem:[%s238 + $0x38] sm:$0xff]
        %v285 = vld [vmem:[%s238 + $0x40] sm:$0xff]
        %v286 = vld [vmem:[%s238 + $0x48] sm:$0xff]
        %v287 = vld [vmem:[%s238 + $0x50] sm:$0xf]
        %v288 = vld [vmem:[%s238 + $0x54] sm:$0xff]
        %v289 = vld [vmem:[%s238 + $0x5c] sm:$0xff]
        %v290 = vld [vmem:[%s238 + $0x64] sm:$0xff]
        %v291 = vld [vmem:[%s238 + $0x6c] sm:$0xf]
        %v292 = vld [vmem:[#allocation5] sm:$0xf]
        %v293 = vld [vmem:[#allocation5 + $0x4] sm:$0xf]
        %v294 = vld [vmem:[#allocation5 + $0x8] sm:$0xf]
        %v295 = vld [vmem:[#allocation5 + $0xc] sm:$0xf]
        %v296 = vld [vmem:[#allocation5 + $0x10] sm:$0xf]
        %v297 = vld [vmem:[#allocation5 + $0x14] sm:$0xf]
        %v298 = vld [vmem:[#allocation5 + $0x18] sm:$0xf]
        %v299 = vld [vmem:[#allocation5 + $0x1c] sm:$0xf]
        %v300 = vld [vmem:[#allocation5 + $0x20] sm:$0xf]
        %v301 = vld [vmem:[#allocation5 + $0x24] sm:$0xf]
        %v302 = vld [vmem:[#allocation5 + $0x28] sm:$0xf]
        %v303 = vld [vmem:[#allocation5 + $0x2c] sm:$0xf]
        %v304 = vld [vmem:[#allocation5 + $0x30] sm:$0xf]
        %v305 = vld [vmem:[#allocation5 + $0x34] sm:$0xf]
        %v306 = vld [vmem:[#allocation5 + $0x38] sm:$0xf]
        %v307 = vld [vmem:[#allocation5 + $0x3c] sm:$0xf]
        %v308 = vld [vmem:[#allocation5 + $0x40] sm:$0xf]
        %v309 = vld [vmem:[#allocation5 + $0x44] sm:$0xf]
        %v310 = vld [vmem:[#allocation5 + $0x48] sm:$0xf]
        %v311 = vld [vmem:[#allocation5 + $0x4c] sm:$0xf]
        %v312 = vld [vmem:[#allocation5 + $0x50] sm:$0xf]
        %v313 = vld [vmem:[#allocation5 + $0x54] sm:$0xf]
        %v314 = vld [vmem:[#allocation5 + $0x58] sm:$0xf]
        %v315 = vld [vmem:[#allocation5 + $0x5c] sm:$0xf]
        %v316 = vld [vmem:[#allocation5 + $0x60] sm:$0xf]
        %v317 = vld [vmem:[#allocation5 + $0x64] sm:$0xf]
        %v318 = vld [vmem:[#allocation5 + $0x68] sm:$0xf]
        %v319 = vld [vmem:[#allocation5 + $0x6c] sm:$0xf]
        %v320 = vld [vmem:[#allocation5 + $0x70] sm:$0xf]
        %v321 = vld [vmem:[#allocation5 + $0x74] sm:$0xf]
        %v322 = vld [vmem:[#allocation5 + $0x78] sm:$0xf]
        %v323 = vld [vmem:[#allocation5 + $0x7c] sm:$0xf]
        %v324 = vld [vmem:[#allocation5 + $0x80] sm:$0xf]
        %v325 = vld [vmem:[#allocation5 + $0x84] sm:$0xf]
        %v326 = vld [vmem:[#allocation5 + $0x88] sm:$0xf]
        %v327 = vld [vmem:[#allocation5 + $0x8c] sm:$0xf]
        %v328 = vld [vmem:[#allocation5 + $0x90] sm:$0xf]
        %v329 = vld [vmem:[#allocation5 + $0x94] sm:$0xf]
        %v330 = vld [vmem:[#allocation5 + $0x98] sm:$0xf]
        %v331 = vld [vmem:[#allocation5 + $0x9c] sm:$0xf]
        %v332 = vld [vmem:[#allocation5 + $0xa0] sm:$0xf]
        %v333 = vld [vmem:[#allocation5 + $0xa4] sm:$0xf]
        %v334 = vld [vmem:[#allocation5 + $0xa8] sm:$0xf]
        %v335 = vld [vmem:[#allocation5 + $0xac] sm:$0xf]
        %v336 = vld [vmem:[#allocation5 + $0xb0] sm:$0xf]
        %v337 = vld [vmem:[#allocation5 + $0xb4] sm:$0xf]
        %v338 = vld [vmem:[#allocation5 + $0xb8] sm:$0xf]
        %v339 = vld [vmem:[#allocation5 + $0xbc] sm:$0xf]
        %v340 = vld [vmem:[#allocation5 + $0xc0] sm:$0xf]
        %v341 = vld [vmem:[#allocation5 + $0xc4] sm:$0xf]
        %v342 = vld [vmem:[#allocation5 + $0xc8] sm:$0xf]
        %v343 = vld [vmem:[#allocation5 + $0xcc] sm:$0xf]
        %v344 = vld [vmem:[#allocation5 + $0xd0] sm:$0xf]
        %v345 = vld [vmem:[#allocation5 + $0xd4] sm:$0xf]
        %v346 = vld [vmem:[#allocation5 + $0xd8] sm:$0xf]
        %v347 = vld [vmem:[#allocation5 + $0xdc] sm:$0xf]
        %v348 = vld [vmem:[#allocation5 + $0xe0] sm:$0xf]
        %v349 = vld [vmem:[#allocation5 + $0xe4] sm:$0xf]
        %v350 = vld [vmem:[#allocation5 + $0xe8] sm:$0xf]
        %v351 = vld [vmem:[#allocation5 + $0xec] sm:$0xf]
        %v352 = vld [vmem:[#allocation5 + $0xf0] sm:$0xf]
        %v353 = vld [vmem:[#allocation5 + $0xf4] sm:$0xf]
        %v354 = vld [vmem:[#allocation5 + $0xf8] sm:$0xf]
        %v355 = vld [vmem:[#allocation5 + $0xfc] sm:$0xf]
        %v356 = vld [vmem:[#allocation5 + $0x100] sm:$0xf]
        %v357 = vld [vmem:[#allocation5 + $0x104] sm:$0xf]
        %v358 = vld [vmem:[#allocation5 + $0x108] sm:$0xf]
        %v359 = vld [vmem:[#allocation5 + $0x10c] sm:$0xf]
        %v360 = vld [vmem:[#allocation5 + $0x110] sm:$0xf]
        %v361 = vld [vmem:[#allocation5 + $0x114] sm:$0xf]
        %v362 = vld [vmem:[#allocation5 + $0x118] sm:$0xf]
        %v363 = vld [vmem:[#allocation5 + $0x11c] sm:$0xf]
        %v364 = vld [vmem:[#allocation5 + $0x120] sm:$0xf]
        %v365 = vld [vmem:[#allocation5 + $0x124] sm:$0xf]
        %v366 = vld [vmem:[#allocation5 + $0x128] sm:$0xf]
        %v367 = vld [vmem:[#allocation5 + $0x12c] sm:$0xf]
        %v368 = vld [vmem:[#allocation5 + $0x130] sm:$0xf]
        %v369 = vld [vmem:[#allocation5 + $0x134] sm:$0xf]
        %v370 = vld [vmem:[#allocation5 + $0x138] sm:$0xf]
        %v371 = vld [vmem:[#allocation5 + $0x13c] sm:$0xf]
        %v372 = vld [vmem:[#allocation5 + $0x140] sm:$0xf]
        %v373 = vld [vmem:[#allocation5 + $0x144] sm:$0xf]
        %v374 = vld [vmem:[#allocation5 + $0x148] sm:$0xf]
        %v375 = vld [vmem:[#allocation5 + $0x14c] sm:$0xf]
        %v376 = vld [vmem:[#allocation5 + $0x150] sm:$0xf]
        %v377 = vld [vmem:[#allocation5 + $0x154] sm:$0xf]
        %v378 = vld [vmem:[#allocation5 + $0x158] sm:$0xf]
        %v379 = vld [vmem:[#allocation5 + $0x15c] sm:$0xf]
        %v380 = vld [vmem:[#allocation5 + $0x160] sm:$0xf]
        %v381 = vld [vmem:[#allocation5 + $0x164] sm:$0xf]
        %v382 = vld [vmem:[#allocation5 + $0x168] sm:$0xf]
        %v383 = vld [vmem:[#allocation5 + $0x16c] sm:$0xf]
        %v384 = vld [vmem:[#allocation5 + $0x170] sm:$0xf]
        %v385 = vld [vmem:[#allocation5 + $0x174] sm:$0xf]
        %v386 = vld [vmem:[#allocation5 + $0x178] sm:$0xf]
        %v387 = vld [vmem:[#allocation5 + $0x17c] sm:$0xf]
        %v388 = vld [vmem:[#allocation5 + $0x180] sm:$0xf]
        %v389 = vld [vmem:[#allocation5 + $0x184] sm:$0xf]
        %v390 = vld [vmem:[#allocation5 + $0x188] sm:$0xf]
        %v391 = vld [vmem:[#allocation5 + $0x18c] sm:$0xf]
        %v392 = vld [vmem:[#allocation5 + $0x190] sm:$0xf]
        %v393 = vld [vmem:[#allocation5 + $0x194] sm:$0xf]
        %v394 = vld [vmem:[#allocation5 + $0x198] sm:$0xf]
        %v395 = vld [vmem:[#allocation5 + $0x19c] sm:$0xf]
        %v396 = vld [vmem:[#allocation5 + $0x1a0] sm:$0xf]
        %v397 = vld [vmem:[#allocation5 + $0x1a4] sm:$0xf]
        %v398 = vld [vmem:[#allocation5 + $0x1a8] sm:$0xf]
        %v399 = vld [vmem:[#allocation5 + $0x1ac] sm:$0xf]
        %v400 = vld [vmem:[#allocation5 + $0x1b0] sm:$0xf]
        %v401 = vld [vmem:[#allocation5 + $0x1b4] sm:$0xf]
        %v402 = vld [vmem:[#allocation5 + $0x1b8] sm:$0xf]
        %v403 = vld [vmem:[#allocation5 + $0x1bc] sm:$0xf]
        %v404 = vld [vmem:[%s2] sm:$0x1]
        %v406 = vlaneseq
        %v407 = vshrl.u32 %v406, 7
        %v408 = vsub.s32 0, %v407
        %v409 = vrot.slane %v404, %v408
        %v427 = vunpack.c.l.b16 %v276
        %v428 = vunpack.c.h.b16 %v276
        %v429 = vunpack.c.l.b16 %v277
        %v430 = vunpack.c.h.b16 %v277
        %v431 = vunpack.c.l.b16 %v278
        %v432 = vunpack.c.h.b16 %v278
        %v433 = vunpack.c.l.b16 %v279
        %v434 = vunpack.c.l.b16 %v280
        %v435 = vunpack.c.h.b16 %v280
        %v436 = vunpack.c.l.b16 %v281
        %v437 = vunpack.c.h.b16 %v281
        %v438 = vunpack.c.l.b16 %v282
        %v439 = vunpack.c.h.b16 %v282
        %v440 = vunpack.c.l.b16 %v283
        %v441 = vunpack.c.l.b16 %v284
        %v442 = vunpack.c.h.b16 %v284
        %v443 = vunpack.c.l.b16 %v285
        %v444 = vunpack.c.h.b16 %v285
        %v445 = vunpack.c.l.b16 %v286
        %v446 = vunpack.c.h.b16 %v286
        %v447 = vunpack.c.l.b16 %v287
        %v448 = vunpack.c.l.b16 %v288
        %v449 = vunpack.c.h.b16 %v288
        %v450 = vunpack.c.l.b16 %v289
        %v451 = vunpack.c.h.b16 %v289
        %v452 = vunpack.c.l.b16 %v290
        %v453 = vunpack.c.h.b16 %v290
        %v454 = vunpack.c.l.b16 %v291
        %v455 = vpack.c.b16 %v434, %v427
        %v456 = vpack.c.b16 %v435, %v428
        %v457 = vpack.c.b16 %v436, %v429
        %v458 = vpack.c.b16 %v437, %v430
        %v459 = vpack.c.b16 %v438, %v431
        %v460 = vpack.c.b16 %v439, %v432
        %v461 = vpack.c.b16 %v440, %v433
        %v462 = vpack.c.b16 %v448, %v441
        %v463 = vpack.c.b16 %v449, %v442
        %v464 = vpack.c.b16 %v450, %v443
        %v465 = vpack.c.b16 %v451, %v444
        %v466 = vpack.c.b16 %v452, %v445
        %v467 = vpack.c.b16 %v453, %v446
        %v468 = vpack.c.b16 %v454, %v447
        %v595 = vunpack.c.l.b16 %v292
        %v596 = vunpack.c.l.b16 %v293
        %v597 = vunpack.c.l.b16 %v294
        %v598 = vunpack.c.l.b16 %v295
        %v599 = vunpack.c.l.b16 %v296
        %v600 = vunpack.c.l.b16 %v297
        %v601 = vunpack.c.l.b16 %v298
        %v602 = vunpack.c.l.b16 %v299
        %v603 = vunpack.c.l.b16 %v300
        %v604 = vunpack.c.l.b16 %v301
        %v605 = vunpack.c.l.b16 %v302
        %v606 = vunpack.c.l.b16 %v303
        %v607 = vunpack.c.l.b16 %v304
        %v608 = vunpack.c.l.b16 %v305
        %v609 = vunpack.c.l.b16 %v306
        %v610 = vunpack.c.l.b16 %v307
        %v611 = vunpack.c.l.b16 %v308
        %v612 = vunpack.c.l.b16 %v309
        %v613 = vunpack.c.l.b16 %v310
        %v614 = vunpack.c.l.b16 %v311
        %v615 = vunpack.c.l.b16 %v312
        %v616 = vunpack.c.l.b16 %v313
        %v617 = vunpack.c.l.b16 %v314
        %v618 = vunpack.c.l.b16 %v315
        %v619 = vunpack.c.l.b16 %v316
        %v620 = vunpack.c.l.b16 %v317
        %v621 = vunpack.c.l.b16 %v318
        %v622 = vunpack.c.l.b16 %v319
        %v623 = vunpack.c.l.b16 %v320
        %v624 = vunpack.c.l.b16 %v321
        %v625 = vunpack.c.l.b16 %v322
        %v626 = vunpack.c.l.b16 %v323
        %v627 = vunpack.c.l.b16 %v324
        %v628 = vunpack.c.l.b16 %v325
        %v629 = vunpack.c.l.b16 %v326
        %v630 = vunpack.c.l.b16 %v327
        %v631 = vunpack.c.l.b16 %v328
        %v632 = vunpack.c.l.b16 %v329
        %v633 = vunpack.c.l.b16 %v330
        %v634 = vunpack.c.l.b16 %v331
        %v635 = vunpack.c.l.b16 %v332
        %v636 = vunpack.c.l.b16 %v333
        %v637 = vunpack.c.l.b16 %v334
        %v638 = vunpack.c.l.b16 %v335
        %v639 = vunpack.c.l.b16 %v336
        %v640 = vunpack.c.l.b16 %v337
        %v641 = vunpack.c.l.b16 %v338
        %v642 = vunpack.c.l.b16 %v339
        %v643 = vunpack.c.l.b16 %v340
        %v644 = vunpack.c.l.b16 %v341
        %v645 = vunpack.c.l.b16 %v342
        %v646 = vunpack.c.l.b16 %v343
        %v647 = vunpack.c.l.b16 %v344
        %v648 = vunpack.c.l.b16 %v345
        %v649 = vunpack.c.l.b16 %v346
        %v650 = vunpack.c.l.b16 %v347
        %v651 = vunpack.c.l.b16 %v348
        %v652 = vunpack.c.l.b16 %v349
        %v653 = vunpack.c.l.b16 %v350
        %v654 = vunpack.c.l.b16 %v351
        %v655 = vunpack.c.l.b16 %v352
        %v656 = vunpack.c.l.b16 %v353
        %v657 = vunpack.c.l.b16 %v354
        %v658 = vunpack.c.l.b16 %v355
        %v659 = vunpack.c.l.b16 %v356
        %v660 = vunpack.c.l.b16 %v357
        %v661 = vunpack.c.l.b16 %v358
        %v662 = vunpack.c.l.b16 %v359
        %v663 = vunpack.c.l.b16 %v360
        %v664 = vunpack.c.l.b16 %v361
        %v665 = vunpack.c.l.b16 %v362
        %v666 = vunpack.c.l.b16 %v363
        %v667 = vunpack.c.l.b16 %v364
        %v668 = vunpack.c.l.b16 %v365
        %v669 = vunpack.c.l.b16 %v366
        %v670 = vunpack.c.l.b16 %v367
        %v671 = vunpack.c.l.b16 %v368
        %v672 = vunpack.c.l.b16 %v369
        %v673 = vunpack.c.l.b16 %v370
        %v674 = vunpack.c.l.b16 %v371
        %v675 = vunpack.c.l.b16 %v372
        %v676 = vunpack.c.l.b16 %v373
        %v677 = vunpack.c.l.b16 %v374
        %v678 = vunpack.c.l.b16 %v375
        %v679 = vunpack.c.l.b16 %v376
        %v680 = vunpack.c.l.b16 %v377
        %v681 = vunpack.c.l.b16 %v378
        %v682 = vunpack.c.l.b16 %v379
        %v683 = vunpack.c.l.b16 %v380
        %v684 = vunpack.c.l.b16 %v381
        %v685 = vunpack.c.l.b16 %v382
        %v686 = vunpack.c.l.b16 %v383
        %v687 = vunpack.c.l.b16 %v384
        %v688 = vunpack.c.l.b16 %v385
        %v689 = vunpack.c.l.b16 %v386
        %v690 = vunpack.c.l.b16 %v387
        %v691 = vunpack.c.l.b16 %v388
        %v692 = vunpack.c.l.b16 %v389
        %v693 = vunpack.c.l.b16 %v390
        %v694 = vunpack.c.l.b16 %v391
        %v695 = vunpack.c.l.b16 %v392
        %v696 = vunpack.c.l.b16 %v393
        %v697 = vunpack.c.l.b16 %v394
        %v698 = vunpack.c.l.b16 %v395
        %v699 = vunpack.c.l.b16 %v396
        %v700 = vunpack.c.l.b16 %v397
        %v701 = vunpack.c.l.b16 %v398
        %v702 = vunpack.c.l.b16 %v399
        %v703 = vunpack.c.l.b16 %v400
        %v704 = vunpack.c.l.b16 %v401
        %v705 = vunpack.c.l.b16 %v402
        %v706 = vunpack.c.l.b16 %v403
        %v707 = vpack.c.b16 %v596, %v595
        %v708 = vpack.c.b16 %v598, %v597
        %v709 = vpack.c.b16 %v600, %v599
        %v710 = vpack.c.b16 %v602, %v601
        %v711 = vpack.c.b16 %v604, %v603
        %v712 = vpack.c.b16 %v606, %v605
        %v713 = vpack.c.b16 %v608, %v607
        %v714 = vpack.c.b16 %v610, %v609
        %v715 = vpack.c.b16 %v612, %v611
        %v716 = vpack.c.b16 %v614, %v613
        %v717 = vpack.c.b16 %v616, %v615
        %v718 = vpack.c.b16 %v618, %v617
        %v719 = vpack.c.b16 %v620, %v619
        %v720 = vpack.c.b16 %v622, %v621
        %v721 = vpack.c.b16 %v624, %v623
        %v722 = vpack.c.b16 %v626, %v625
        %v723 = vpack.c.b16 %v628, %v627
        %v724 = vpack.c.b16 %v630, %v629
        %v725 = vpack.c.b16 %v632, %v631
        %v726 = vpack.c.b16 %v634, %v633
        %v727 = vpack.c.b16 %v636, %v635
        %v728 = vpack.c.b16 %v638, %v637
        %v729 = vpack.c.b16 %v640, %v639
        %v730 = vpack.c.b16 %v642, %v641
        %v731 = vpack.c.b16 %v644, %v643
        %v732 = vpack.c.b16 %v646, %v645
        %v733 = vpack.c.b16 %v648, %v647
        %v734 = vpack.c.b16 %v650, %v649
        %v735 = vpack.c.b16 %v652, %v651
        %v736 = vpack.c.b16 %v654, %v653
        %v737 = vpack.c.b16 %v656, %v655
        %v738 = vpack.c.b16 %v658, %v657
        %v739 = vpack.c.b16 %v660, %v659
        %v740 = vpack.c.b16 %v662, %v661
        %v741 = vpack.c.b16 %v664, %v663
        %v742 = vpack.c.b16 %v666, %v665
        %v743 = vpack.c.b16 %v668, %v667
        %v744 = vpack.c.b16 %v670, %v669
        %v745 = vpack.c.b16 %v672, %v671
        %v746 = vpack.c.b16 %v674, %v673
        %v747 = vpack.c.b16 %v676, %v675
        %v748 = vpack.c.b16 %v678, %v677
        %v749 = vpack.c.b16 %v680, %v679
        %v750 = vpack.c.b16 %v682, %v681
        %v751 = vpack.c.b16 %v684, %v683
        %v752 = vpack.c.b16 %v686, %v685
        %v753 = vpack.c.b16 %v688, %v687
        %v754 = vpack.c.b16 %v690, %v689
        %v755 = vpack.c.b16 %v692, %v691
        %v756 = vpack.c.b16 %v694, %v693
        %v757 = vpack.c.b16 %v696, %v695
        %v758 = vpack.c.b16 %v698, %v697
        %v759 = vpack.c.b16 %v700, %v699
        %v760 = vpack.c.b16 %v702, %v701
        %v761 = vpack.c.b16 %v704, %v703
        %v762 = vpack.c.b16 %v706, %v705
        %819 = vmatprep.subr.bf16.mxu0 0
        %820 = vmatpush1.bf16.msra.mxu0 %v714
        %821 = vmatprep.subr.bf16.mxu0 0
        %822 = vmatpush1.bf16.msra.mxu0 %v713
        %823 = vmatprep.subr.bf16.mxu0 0
        %824 = vmatpush1.bf16.msra.mxu0 %v712
        %825 = vmatprep.subr.bf16.mxu0 0
        %826 = vmatpush1.bf16.msra.mxu0 %v711
        %827 = vmatprep.subr.bf16.mxu0 0
        %828 = vmatpush1.bf16.msra.mxu0 %v710
        %829 = vmatprep.subr.bf16.mxu0 0
        %830 = vmatpush1.bf16.msra.mxu0 %v709
        %831 = vmatprep.subr.bf16.mxu0 0
        %832 = vmatpush1.bf16.msra.mxu0 %v708
        %833 = vmatprep.subr.bf16.mxu0 0
        %834 = vmatpush1.bf16.msra.mxu0 %v707
        %835 = vmatprep.subr.bf16.mxu0 0
        %836 = vmatpush2.bf16.msra.mxu0 %v722
        %837 = vmatprep.subr.bf16.mxu0 0
        %838 = vmatpush2.bf16.msra.mxu0 %v721
        %839 = vmatprep.subr.bf16.mxu0 0
        %840 = vmatpush2.bf16.msra.mxu0 %v720
        %841 = vmatprep.subr.bf16.mxu0 0
        %842 = vmatpush2.bf16.msra.mxu0 %v719
        %843 = vmatprep.subr.bf16.mxu0 0
        %844 = vmatpush2.bf16.msra.mxu0 %v718
        %845 = vmatprep.subr.bf16.mxu0 0
        %846 = vmatpush2.bf16.msra.mxu0 %v717
        %847 = vmatprep.subr.bf16.mxu0 0
        %848 = vmatpush2.bf16.msra.mxu0 %v716
        %849 = vmatprep.subr.bf16.mxu0 0
        %850 = vmatpush2.bf16.msra.mxu0 %v715
        %851 = vmatprep.mubr.bf16.mxu0 %v456
        %852 = vmatmul.mubr.bf16.gmra.mxu0 %v455
        %v853 = vpop.f32.mrf.mxu0
        %v854 = vadd.f32 %v409, %v853
        %v855 = vpop.f32.mrf.mxu0
        %v856 = vpop.f32.mrf.mxu0
        %v857 = vadd.f32 %v409, %v856
        %v858 = vpop.f32.mrf.mxu0
        %859 = vmatprep.mubr.bf16.mxu0 %v463
        %860 = vmatmul.mubr.bf16.gmra.mxu0 %v462
        %v861 = vpop.f32.mrf.mxu0
        %v862 = vadd.f32 %v409, %v861
        %v863 = vpop.f32.mrf.mxu0
        %v864 = vpop.f32.mrf.mxu0
        %v865 = vadd.f32 %v409, %v864
        %v866 = vpop.f32.mrf.mxu0
        %867 = vdwg.mxu0
        %868 = vmatprep.subr.bf16.mxu0 0
        %869 = vmatpush1.bf16.msra.mxu0 %v730
        %870 = vmatprep.subr.bf16.mxu0 0
        %871 = vmatpush1.bf16.msra.mxu0 %v729
        %872 = vmatprep.subr.bf16.mxu0 0
        %873 = vmatpush1.bf16.msra.mxu0 %v728
        %874 = vmatprep.subr.bf16.mxu0 0
        %875 = vmatpush1.bf16.msra.mxu0 %v727
        %876 = vmatprep.subr.bf16.mxu0 0
        %877 = vmatpush1.bf16.msra.mxu0 %v726
        %878 = vmatprep.subr.bf16.mxu0 0
        %879 = vmatpush1.bf16.msra.mxu0 %v725
        %880 = vmatprep.subr.bf16.mxu0 0
        %881 = vmatpush1.bf16.msra.mxu0 %v724
        %882 = vmatprep.subr.bf16.mxu0 0
        %883 = vmatpush1.bf16.msra.mxu0 %v723
        %884 = vmatprep.subr.bf16.mxu0 0
        %885 = vmatpush2.bf16.msra.mxu0 %v738
        %886 = vmatprep.subr.bf16.mxu0 0
        %887 = vmatpush2.bf16.msra.mxu0 %v737
        %888 = vmatprep.subr.bf16.mxu0 0
        %889 = vmatpush2.bf16.msra.mxu0 %v736
        %890 = vmatprep.subr.bf16.mxu0 0
        %891 = vmatpush2.bf16.msra.mxu0 %v735
        %892 = vmatprep.subr.bf16.mxu0 0
        %893 = vmatpush2.bf16.msra.mxu0 %v734
        %894 = vmatprep.subr.bf16.mxu0 0
        %895 = vmatpush2.bf16.msra.mxu0 %v733
        %896 = vmatprep.subr.bf16.mxu0 0
        %897 = vmatpush2.bf16.msra.mxu0 %v732
        %898 = vmatprep.subr.bf16.mxu0 0
        %899 = vmatpush2.bf16.msra.mxu0 %v731
        %900 = vmatprep.mubr.bf16.mxu0 %v458
        %901 = vmatmul.mubr.bf16.gmra.mxu0 %v457
        %v902 = vpop.f32.mrf.mxu0
        %v903 = vadd.f32 %v854, %v902
        %v904 = vpop.f32.mrf.mxu0
        %v905 = vpop.f32.mrf.mxu0
        %v906 = vadd.f32 %v857, %v905
        %v907 = vpop.f32.mrf.mxu0
        %908 = vmatprep.mubr.bf16.mxu0 %v465
        %909 = vmatmul.mubr.bf16.gmra.mxu0 %v464
        %v910 = vpop.f32.mrf.mxu0
        %v911 = vadd.f32 %v862, %v910
        %v912 = vpop.f32.mrf.mxu0
        %v913 = vpop.f32.mrf.mxu0
        %v914 = vadd.f32 %v865, %v913
        %v915 = vpop.f32.mrf.mxu0
        %916 = vdwg.mxu0
        %917 = vmatprep.subr.bf16.mxu0 0
        %918 = vmatpush1.bf16.msra.mxu0 %v746
        %919 = vmatprep.subr.bf16.mxu0 0
        %920 = vmatpush1.bf16.msra.mxu0 %v745
        %921 = vmatprep.subr.bf16.mxu0 0
        %922 = vmatpush1.bf16.msra.mxu0 %v744
        %923 = vmatprep.subr.bf16.mxu0 0
        %924 = vmatpush1.bf16.msra.mxu0 %v743
        %925 = vmatprep.subr.bf16.mxu0 0
        %926 = vmatpush1.bf16.msra.mxu0 %v742
        %927 = vmatprep.subr.bf16.mxu0 0
        %928 = vmatpush1.bf16.msra.mxu0 %v741
        %929 = vmatprep.subr.bf16.mxu0 0
        %930 = vmatpush1.bf16.msra.mxu0 %v740
        %931 = vmatprep.subr.bf16.mxu0 0
        %932 = vmatpush1.bf16.msra.mxu0 %v739
        %933 = vmatprep.subr.bf16.mxu0 0
        %934 = vmatpush2.bf16.msra.mxu0 %v754
        %935 = vmatprep.subr.bf16.mxu0 0
        %936 = vmatpush2.bf16.msra.mxu0 %v753
        %937 = vmatprep.subr.bf16.mxu0 0
        %938 = vmatpush2.bf16.msra.mxu0 %v752
        %939 = vmatprep.subr.bf16.mxu0 0
        %940 = vmatpush2.bf16.msra.mxu0 %v751
        %941 = vmatprep.subr.bf16.mxu0 0
        %942 = vmatpush2.bf16.msra.mxu0 %v750
        %943 = vmatprep.subr.bf16.mxu0 0
        %944 = vmatpush2.bf16.msra.mxu0 %v749
        %945 = vmatprep.subr.bf16.mxu0 0
        %946 = vmatpush2.bf16.msra.mxu0 %v748
        %947 = vmatprep.subr.bf16.mxu0 0
        %948 = vmatpush2.bf16.msra.mxu0 %v747
        %949 = vmatprep.mubr.bf16.mxu0 %v460
        %950 = vmatmul.mubr.bf16.gmra.mxu0 %v459
        %v951 = vpop.f32.mrf.mxu0
        %v952 = vadd.f32 %v903, %v951
        %v953 = vpop.f32.mrf.mxu0
        %v954 = vpop.f32.mrf.mxu0
        %v955 = vadd.f32 %v906, %v954
        %v956 = vpop.f32.mrf.mxu0
        %957 = vmatprep.mubr.bf16.mxu0 %v467
        %958 = vmatmul.mubr.bf16.gmra.mxu0 %v466
        %v959 = vpop.f32.mrf.mxu0
        %v960 = vadd.f32 %v911, %v959
        %v961 = vpop.f32.mrf.mxu0
        %v962 = vpop.f32.mrf.mxu0
        %v963 = vadd.f32 %v914, %v962
        %v964 = vpop.f32.mrf.mxu0
        %965 = vdwg.mxu0
        %966 = vmatprep.subr.bf16.mxu0 0
        %967 = vmatpush1.bf16.msra.mxu0 %v762
        %968 = vmatprep.subr.bf16.mxu0 0
        %969 = vmatpush1.bf16.msra.mxu0 %v761
        %970 = vmatprep.subr.bf16.mxu0 0
        %971 = vmatpush1.bf16.msra.mxu0 %v760
        %972 = vmatprep.subr.bf16.mxu0 0
        %973 = vmatpush1.bf16.msra.mxu0 %v759
        %974 = vmatprep.subr.bf16.mxu0 0
        %975 = vmatpush1.bf16.msra.mxu0 %v758
        %976 = vmatprep.subr.bf16.mxu0 0
        %977 = vmatpush1.bf16.msra.mxu0 %v757
        %978 = vmatprep.subr.bf16.mxu0 0
        %979 = vmatpush1.bf16.msra.mxu0 %v756
        %980 = vmatprep.subr.bf16.mxu0 0
        %981 = vmatpush1.bf16.msra.mxu0 %v755
        %982 = vmatprep.subr.bf16.mxu0 0
        %983 = vmatpush2.bf16.msra.mxu0 0
        %984 = vmatprep.subr.bf16.mxu0 0
        %985 = vmatpush2.bf16.msra.mxu0 0
        %986 = vmatprep.subr.bf16.mxu0 0
        %987 = vmatpush2.bf16.msra.mxu0 0
        %988 = vmatprep.subr.bf16.mxu0 0
        %989 = vmatpush2.bf16.msra.mxu0 0
        %990 = vmatprep.subr.bf16.mxu0 0
        %991 = vmatpush2.bf16.msra.mxu0 0
        %992 = vmatprep.subr.bf16.mxu0 0
        %993 = vmatpush2.bf16.msra.mxu0 0
        %994 = vmatprep.subr.bf16.mxu0 0
        %995 = vmatpush2.bf16.msra.mxu0 0
        %996 = vmatprep.subr.bf16.mxu0 0
        %997 = vmatpush2.bf16.msra.mxu0 0
        %998 = vmatprep.mubr.bf16.mxu0 0
        %999 = vmatmul.mubr.bf16.gmra.mxu0 %v461
        %v1000 = vpop.f32.mrf.mxu0
        %v1001 = vadd.f32 %v952, %v1000
        %v1002 = vpop.f32.mrf.mxu0
        %v1003 = vpop.f32.mrf.mxu0
        %v1004 = vadd.f32 %v955, %v1003
        %v1005 = vpop.f32.mrf.mxu0
        %1006 = vmatprep.mubr.bf16.mxu0 0
        %1007 = vmatmul.mubr.bf16.gmra.mxu0 %v468
        %v1008 = vpop.f32.mrf.mxu0
        %v1009 = vadd.f32 %v960, %v1008
        %v1010 = vpop.f32.mrf.mxu0
        %v1011 = vpop.f32.mrf.mxu0
        %v1012 = vadd.f32 %v963, %v1011
        %v1013 = vpop.f32.mrf.mxu0
        %1014 = vdwg.mxu0
        %v1015 = vmax.f32 %v1001, 0.0
        %v1016 = vmax.f32 %v1004, 0.0
        %v1017 = vmax.f32 %v1009, 0.0
        %v1018 = vmax.f32 %v1012, 0.0
        %v1019 = vpack.c.bf16 %v1016, %v1015
        %v1020 = vpack.c.bf16 %v1018, %v1017
        %v1021 = vld [vmem:[#allocation7] sm:$0xf]
        %v1022 = vld [vmem:[#allocation7 + $0x4] sm:$0xf]
        %v1023 = vld [vmem:[#allocation7 + $0x8] sm:$0xf]
        %v1024 = vld [vmem:[#allocation7 + $0xc] sm:$0xf]
        %v1025 = vld [vmem:[#allocation7 + $0x10] sm:$0xf]
        %v1026 = vld [vmem:[#allocation7 + $0x14] sm:$0xf]
        %v1027 = vld [vmem:[#allocation7 + $0x18] sm:$0xf]
        %v1028 = vld [vmem:[#allocation7 + $0x1c] sm:$0xf]
        %v1029 = vld [vmem:[#allocation7 + $0x20] sm:$0xf]
        %v1030 = vld [vmem:[#allocation7 + $0x24] sm:$0xf]
        %v1031 = vld [vmem:[#allocation7 + $0x28] sm:$0xf]
        %v1032 = vld [vmem:[#allocation7 + $0x2c] sm:$0xf]
        %v1033 = vld [vmem:[#allocation7 + $0x30] sm:$0xf]
        %v1034 = vld [vmem:[#allocation7 + $0x34] sm:$0xf]
        %v1035 = vld [vmem:[#allocation7 + $0x38] sm:$0xf]
        %v1036 = vld [vmem:[#allocation7 + $0x3c] sm:$0xf]
        %v1037 = vld [vmem:[%s4] sm:$0x1]
        %v1039 = vlaneseq
        %v1040 = vshrl.u32 %v1039, 7
        %v1041 = vsub.s32 0, %v1040
        %v1042 = vrot.slane %v1037, %v1041
        %v1060 = vunpack.c.l.b16 %v1021
        %v1061 = vunpack.c.l.b16 %v1022
        %v1062 = vunpack.c.l.b16 %v1023
        %v1063 = vunpack.c.l.b16 %v1024
        %v1064 = vunpack.c.l.b16 %v1025
        %v1065 = vunpack.c.l.b16 %v1026
        %v1066 = vunpack.c.l.b16 %v1027
        %v1067 = vunpack.c.l.b16 %v1028
        %v1068 = vunpack.c.l.b16 %v1029
        %v1069 = vunpack.c.l.b16 %v1030
        %v1070 = vunpack.c.l.b16 %v1031
        %v1071 = vunpack.c.l.b16 %v1032
        %v1072 = vunpack.c.l.b16 %v1033
        %v1073 = vunpack.c.l.b16 %v1034
        %v1074 = vunpack.c.l.b16 %v1035
        %v1075 = vunpack.c.l.b16 %v1036
        %v1076 = vpack.c.b16 %v1061, %v1060
        %v1077 = vpack.c.b16 %v1063, %v1062
        %v1078 = vpack.c.b16 %v1065, %v1064
        %v1079 = vpack.c.b16 %v1067, %v1066
        %v1080 = vpack.c.b16 %v1069, %v1068
        %v1081 = vpack.c.b16 %v1071, %v1070
        %v1082 = vpack.c.b16 %v1073, %v1072
        %v1083 = vpack.c.b16 %v1075, %v1074
        %1092 = vmatprep.subr.bf16.mxu0 0
        %1093 = vmatpush1.bf16.msra.mxu0 %v1083
        %1094 = vmatprep.subr.bf16.mxu0 0
        %1095 = vmatpush1.bf16.msra.mxu0 %v1082
        %1096 = vmatprep.subr.bf16.mxu0 0
        %1097 = vmatpush1.bf16.msra.mxu0 %v1081
        %1098 = vmatprep.subr.bf16.mxu0 0
        %1099 = vmatpush1.bf16.msra.mxu0 %v1080
        %1100 = vmatprep.subr.bf16.mxu0 0
        %1101 = vmatpush1.bf16.msra.mxu0 %v1079
        %1102 = vmatprep.subr.bf16.mxu0 0
        %1103 = vmatpush1.bf16.msra.mxu0 %v1078
        %1104 = vmatprep.subr.bf16.mxu0 0
        %1105 = vmatpush1.bf16.msra.mxu0 %v1077
        %1106 = vmatprep.subr.bf16.mxu0 0
        %1107 = vmatpush1.bf16.msra.mxu0 %v1076
        %1108 = vmatprep.subr.bf16.mxu0 0
        %1109 = vmatpush2.bf16.msra.mxu0 0
        %1110 = vmatprep.subr.bf16.mxu0 0
        %1111 = vmatpush2.bf16.msra.mxu0 0
        %1112 = vmatprep.subr.bf16.mxu0 0
        %1113 = vmatpush2.bf16.msra.mxu0 0
        %1114 = vmatprep.subr.bf16.mxu0 0
        %1115 = vmatpush2.bf16.msra.mxu0 0
        %1116 = vmatprep.subr.bf16.mxu0 0
        %1117 = vmatpush2.bf16.msra.mxu0 0
        %1118 = vmatprep.subr.bf16.mxu0 0
        %1119 = vmatpush2.bf16.msra.mxu0 0
        %1120 = vmatprep.subr.bf16.mxu0 0
        %1121 = vmatpush2.bf16.msra.mxu0 0
        %1122 = vmatprep.subr.bf16.mxu0 0
        %1123 = vmatpush2.bf16.msra.mxu0 0
        %1124 = vmatprep.mubr.bf16.mxu0 0
        %1125 = vmatmul.mubr.bf16.gmra.mxu0 %v1019
        %v1126 = vpop.f32.mrf.mxu0
        %v1127 = vadd.f32 %v1042, %v1126
        %v1128 = vpop.f32.mrf.mxu0
        %v1129 = vpop.f32.mrf.mxu0
        %v1130 = vadd.f32 %v1042, %v1129
        %v1131 = vpop.f32.mrf.mxu0
        %1132 = vmatprep.mubr.bf16.mxu0 0
        %1133 = vmatmul.mubr.bf16.gmra.mxu0 %v1020
        %v1134 = vpop.f32.mrf.mxu0
        %v1135 = vadd.f32 %v1042, %v1134
        %v1136 = vpop.f32.mrf.mxu0
        %v1137 = vpop.f32.mrf.mxu0
        %v1138 = vadd.f32 %v1042, %v1137
        %v1139 = vpop.f32.mrf.mxu0
        %1140 = vdwg.mxu0
        %v1141 = vmax.f32 %v1127, 0.0
        %v1142 = vmax.f32 %v1130, 0.0
        %v1143 = vmax.f32 %v1135, 0.0
        %v1144 = vmax.f32 %v1138, 0.0
        %v1145 = vlaneseq
        %v1146 = vand.u32 %v1145, 127
        %vm1147 = vcmp.lt.s32.totalorder %v1146, 50
        %v1148 = vsel %vm1147, %v1141, -1e+30
        %v1149 = vsel %vm1147, %v1142, -1e+30
        %v1150 = vsel %vm1147, %v1143, -1e+30
        %v1151 = vsel %vm1147, %v1144, -1e+30
        %1152 = vmax.xlane.f32.xlu0 %v1148
        %v1153 = vpop.xlane.xlu0 %1152
        %1154 = vmax.xlane.f32.xlu0 %v1149
        %v1155 = vpop.xlane.xlu0 %1154
        %1156 = vmax.xlane.f32.xlu0 %v1150
        %v1157 = vpop.xlane.xlu0 %1156
        %1158 = vmax.xlane.f32.xlu0 %v1151
        %v1159 = vpop.xlane.xlu0 %1158
        %v1160 = vsub.f32 %v1148, %v1153
        %v1161 = vsub.f32 %v1149, %v1155
        %v1162 = vsub.f32 %v1150, %v1157
        %v1163 = vsub.f32 %v1151, %v1159
        %v1164 = vmul.f32 %v1160, 1.442695
        %v1165 = vpow.pop %v1164
        %v1166 = vmul.f32 %v1161, 1.442695
        %v1167 = vpow.pop %v1166
        %v1168 = vmul.f32 %v1162, 1.442695
        %v1169 = vpow.pop %v1168
        %v1170 = vmul.f32 %v1163, 1.442695
        %v1171 = vpow.pop %v1170
        %1172 = vadd.xlane.f32.xlu0 %v1165
        %v1173 = vpop.xlane.xlu0 %1172
        %1174 = vadd.xlane.f32.xlu0 %v1167
        %v1175 = vpop.xlane.xlu0 %1174
        %1176 = vadd.xlane.f32.xlu0 %v1169
        %v1177 = vpop.xlane.xlu0 %1176
        %1178 = vadd.xlane.f32.xlu0 %v1171
        %v1179 = vpop.xlane.xlu0 %1178
        %v1180 = vlog2.pop %v1173
        %v1181 = vmul.f32 %v1180, 0.6931472
        %v1182 = vlog2.pop %v1175
        %v1183 = vmul.f32 %v1182, 0.6931472
        %v1184 = vlog2.pop %v1177
        %v1185 = vmul.f32 %v1184, 0.6931472
        %v1186 = vlog2.pop %v1179
        %v1187 = vmul.f32 %v1186, 0.6931472
        %v1188 = vsub.f32 %v1160, %v1181
        %v1189 = vsub.f32 %v1161, %v1183
        %v1190 = vsub.f32 %v1162, %v1185
        %v1191 = vsub.f32 %v1163, %v1187
        %1192 = vst [vmem:[%s272] sm:$0xff] %v1188
        %1193 = vst [vmem:[%s272 + $0x8] sm:$0xff] %v1189
        %1194 = vst [vmem:[%s272 + $0x10] sm:$0xff] %v1190
        %1195 = vst [vmem:[%s272 + $0x18] sm:$0xff] %v1191
        %s1196 = sand.u32 %s141, 1
        %s1197 = scalar_lea.sflag [#allocation4], %s1196
        %s1198 = sand.u32 %s141, 1
        %s1199 = smul.addr %s1198, 32
        %s1200 = scalar_lea.vmem [#allocation8], %s1199
        // Predicated region
        $region53: #{tpu_custom_call.1} parent=39 // pred_check
          %p1201 = pneg %p151
        $region54: #{tpu_custom_call.1} parent=39 // pred_check_branch
          %1203 = sbr.rel (%p1201) target = $region56
        $region55: #{tpu_custom_call.1} parent=39 // pred_region
          %s1204 = smul.u32 4, %s23
          %s1206 = ssub.s32 512, 512
          %1207 = vsyncadd %s1197, %s1206
          %s1208 = smul.addr %s1204, 128
          %s1209 = scalar_lea.hbm %s5, %s1208
          %s1210 = sshll.u32 %s1200, 4
          %s1211 = int_to_ptr.vmem [resolvable:$true] %s1210
          %1216 = dma.vmem_to_hbm [thread:$0]  %s1211, 512, %s1209, %s1197, 128, 128, 8
        $region56: #{tpu_custom_call.1} parent=39 // pred_fallthru
          _
      $region40: #{tpu_custom_call.1} parent=5 // pred_fallthru
        _
      %p1217 = scmp.le.s32.totalorder 2, %s18
      // Predicated region
      $region57: #{tpu_custom_call.1} parent=5 // pred_check
        %p1218 = pneg %p1217
      $region58: #{tpu_custom_call.1} parent=5 // pred_check_branch
        %1220 = sbr.rel (%p1218) target = $region60
      $region59: #{tpu_custom_call.1} parent=5 // pred_region
        %s1221 = ssub.s32 %s18, 2
        // Predicated region
        $region61: #{tpu_custom_call.1} parent=59 // pred_check
          %p1222 = pneg %p157
        $region62: #{tpu_custom_call.1} parent=59 // pred_check_branch
          %1224 = sbr.rel (%p1222) target = $region64
        $region63: #{tpu_custom_call.1} parent=59 // pred_region
          %s1225 = sand.u32 %s142, 1
          %s1226 = scalar_lea.sflag [#allocation4], %s1225
          %s1227 = sand.u32 %s142, 1
          %s1228 = smul.addr %s1227, 32
          %s1229 = scalar_lea.vmem [#allocation8], %s1228
          %1230 = dma.done %s1226, 512
        $region64: #{tpu_custom_call.1} parent=59 // pred_fallthru
          _
      $region60: #{tpu_custom_call.1} parent=5 // pred_fallthru
        _
    $region6: #{tpu_custom_call.1} parent=1 // loop_footer
      %s22 = sadd.s32 1, %s18
    $region7: #{tpu_custom_call.1} parent=1 // loop_footer_branch
      %17 = sbr.rel target = $region3
    $region8: #{tpu_custom_call.1} parent=1 // loop_exit
      _
    %1231 = vsyncpa [#allocation3], 1
    %s1232 = scalar_lea.sflag [#allocation3], 1
    %1233 = vsyncpa %s1232, 1
    %1234 = vsyncpa [#allocation6], 1
    %1235 = vsyncpa [#allocation4], 1
    %s1236 = scalar_lea.sflag [#allocation4], 1
    %1237 = vsyncpa %s1236, 1

</llo_original>
